<compile_context>
chip_gen: v6e
topology: v6e:2x2x1
jax: 0.10.0
libtpu: 0.0.40
codegen_flags: <defaults>
</compile_context>

<pallas_src>
import jax
import jax.numpy as jnp
from jax import lax
from jax.experimental import pallas as pl
from jax.experimental.pallas import tpu as pltpu


# --------------------------------------------------------------------------- #
# Kernel
# --------------------------------------------------------------------------- #
def _projector_kernel(x_ref, w1_ref, b1_ref, w2t_ref, b2t_ref, o_ref):
    # x_ref:   (1, tt, D)   activation tile, native dtype
    # w1_ref:  (D, H1)      layer-1 weight (f32, resident)
    # b1_ref:  (1, H1)      layer-1 bias
    # w2t_ref: (H2, H1)     layer-2 weight, pre-transposed
    # b2t_ref: (H2, 1)      layer-2 bias as a column
    # o_ref:   (1, H2, tt)  output tile — lane axis is T (lane-dense store)
    x = x_ref[0].astype(jnp.float32)                          # == x.float()
    h = jnp.dot(x, w1_ref[...], preferred_element_type=jnp.float32) + b1_ref[...]
    h = jnp.maximum(h, 0.0)                                   # (tt, H1), f32
    # Fused Linear2 + transpose(1, 2): (h @ W2 + b2)^T computed as an NT-form
    # matmul so the result is already (H2, tt).  If a bundle dump ever shows an
    # XLU vxpose of `h` here, switch to pl.dot(w2t_ref[...], h, trans_b=True).
    y_t = lax.dot_general(
        w2t_ref[...], h,
        dimension_numbers=(((1,), (1,)), ((), ())),
        preferred_element_type=jnp.float32,
    ) + b2t_ref[...]                                          # (H2, tt)
    o_ref[0] = y_t.astype(o_ref.dtype)


# --------------------------------------------------------------------------- #
# VMEM budgeting (generation-aware)
# --------------------------------------------------------------------------- #
def _pad(n, m):
    return -(-n // m) * m


def _vmem_capacity_bytes():
    """Per-TensorCore VMEM capacity; conservative (v7x) fallback if unknown."""
    try:
        cap = int(pltpu.get_tpu_info().vmem_capacity_bytes)
        if cap > 0:
            return cap
    except Exception:
        pass
    return 64 * 1024 * 1024


def _vmem_estimate(tt, D, H1, H2, x_itemsize, x_buffers, weight_buffers):
    """Rough per-step VMEM footprint (bytes), including (8,128) padding."""
    xbuf = 2 if x_buffers is None else x_buffers
    wbuf = 2 if weight_buffers is None else weight_buffers
    f32 = 4
    weights = f32 * wbuf * (
        _pad(D, 8) * _pad(H1, 128)          # W1
        + 8 * _pad(H1, 128)                 # b1
        + _pad(H2, 8) * _pad(H1, 128)       # W2^T
        + _pad(H2, 8) * 128)                # b2 column
    streams = (xbuf * _pad(tt, 8) * _pad(D, 128) * x_itemsize   # x tiles
               + 2 * f32 * _pad(H2, 8) * _pad(tt, 128))         # out tiles
    working = f32 * _pad(tt, 8) * (_pad(D, 128) + _pad(H1, 128) + 128)
    return weights + streams + working


def _choose_t_tile(T, D, H1, H2, x_itemsize, x_buffers, weight_buffers,
                   vmem_capacity, max_tile=2048):
    """Largest 128-aligned T-tile that fits the VMEM budget; full T when small."""
    if T <= 256:
        return T
    budget = int(vmem_capacity * 0.55)
    cap = min(max_tile, _pad(T, 128))
    fitting = [c for c in range(cap, 127, -128)
               if _vmem_estimate(c, D, H1, H2, x_itemsize,
                                 x_buffers, weight_buffers) <= budget]
    if not fitting:
        return 128
    for c in fitting:
        if T % c == 0:
            return c                      # no ragged last tile
    # Ragged last tile: safe because there is no cross-row reduction and the
    # out-of-range output rows are masked on the store.  Do NOT add a reduction
    # over T without revisiting this.
    return fitting[0]


# --------------------------------------------------------------------------- #
# pallas_call builder
# --------------------------------------------------------------------------- #
def _build_projector_call(B, T, D, H1, H2, tt, x_dtype, out_dtype,
                          x_buffers, weight_buffers, vmem_capacity):
    n_t = pl.cdiv(T, tt)
    # Put the larger parallel extent first so v7x's two TensorCores both get
    # work even when B == 1 (or is odd).  Both orders are correct.
    t_major = n_t >= B

    def _bspec(shape, index_map, buffers):
        kwargs = {}
        if buffers is not None:
            kwargs["pipeline_mode"] = pl.Buffered(buffers)
        return pl.BlockSpec(shape, index_map, **kwargs)

    if t_major:
        grid = (n_t, B)
        x_map = lambda t, b: (b, t, 0)
        o_map = lambda t, b: (b, 0, t)
    else:
        grid = (B, n_t)
        x_map = lambda b, t: (b, t, 0)
        o_map = lambda b, t: (b, 0, t)

    const2 = lambda *_: (0, 0)

    x_itemsize = jnp.dtype(x_dtype).itemsize
    est = _vmem_estimate(tt, D, H1, H2, x_itemsize, x_buffers, weight_buffers)
    # Always emit an explicit limit (v5e default scoped limit is only 16 MiB);
    # clamp to per-TC capacity (v7x has only 64 MiB).
    vmem_limit = min(max(int(est * 1.5) + (2 << 20), 32 << 20),
                     int(vmem_capacity * 0.9))

    flops = 2 * B * T * (D * H1 + H1 * H2)
    bytes_accessed = (B * T * D * x_itemsize
                      + 4 * (D * H1 + H1 + H1 * H2 + H2)
                      + B * H2 * T * jnp.dtype(out_dtype).itemsize)

    return pl.pallas_call(
        _projector_kernel,
        out_shape=jax.ShapeDtypeStruct((B, H2, T), out_dtype),
        grid_spec=pltpu.PrefetchScalarGridSpec(
            num_scalar_prefetch=0,
            grid=grid,
            in_specs=[
                _bspec((1, tt, D), x_map, x_buffers),       # x tile (streamed)
                _bspec((D, H1), const2, weight_buffers),    # W1 (resident)
                _bspec((1, H1), const2, weight_buffers),    # b1
                _bspec((H2, H1), const2, weight_buffers),   # W2^T (resident)
                _bspec((H2, 1), const2, weight_buffers),    # b2 column
            ],
            out_specs=pl.BlockSpec((1, H2, tt), o_map),
        ),
        compiler_params=pltpu.CompilerParams(
            dimension_semantics=("parallel", "parallel"),
            vmem_limit_bytes=vmem_limit,
        ),
        cost_estimate=pl.CostEstimate(
            flops=flops, transcendentals=0, bytes_accessed=bytes_accessed),
    )


# --------------------------------------------------------------------------- #
# Public wrapper
# --------------------------------------------------------------------------- #
def projector_forward(x, w1, b1, w2, b2, *, t_tile=None, out_dtype=jnp.float32):
    """
    x:  (B, T, input_dims), any float dtype (cast to f32 inside the kernel,
        matching the module's x.float()).
    w1: (input_dims, H1), b1: (H1,) or (1, H1)
    w2: (H1, H2),         b2: (H2,) or (1, H2)
    Returns (B, H2, T) in `out_dtype` (float32 by default, matching Projector).
    """
    B, T, D = x.shape
    H1 = w1.shape[1]
    H2 = w2.shape[1]

    # Tiny one-time parameter re-layouts so the kernel can write (H2, tt) directly.
    w1f = w1.astype(jnp.float32)
    b1r = jnp.reshape(b1.astype(jnp.float32), (1, H1))
    w2t = jnp.transpose(w2.astype(jnp.float32))               # (H2, H1)
    b2t = jnp.reshape(b2.astype(jnp.float32), (H2, 1))
    args = (x, w1f, b1r, w2t, b2t)

    vmem_capacity = _vmem_capacity_bytes()
    x_itemsize = jnp.dtype(x.dtype).itemsize

    # Preferred: single-buffered resident weights + triple-buffered x stream.
    # Fallback: Pallas default buffering, if pipeline_mode=Buffered is rejected
    # by this Pallas version.  The final config re-raises, so genuine compile /
    # VMEM errors are never silently swallowed.
    configs = ((3, 1), (None, None))
    for idx, (x_buffers, weight_buffers) in enumerate(configs):
        tt = t_tile if t_tile is not None else _choose_t_tile(
            T, D, H1, H2, x_itemsize, x_buffers, weight_buffers, vmem_capacity)
        call = _build_projector_call(B, T, D, H1, H2, tt, x.dtype, out_dtype,
                                     x_buffers, weight_buffers, vmem_capacity)
        try:
            return call(*args)
        except Exception:
            if idx == len(configs) - 1:
                raise


# --------------------------------------------------------------------------- #
# Deterministic init mirroring nn.Linear (U(-1/sqrt(fan_in), 1/sqrt(fan_in)))
# --------------------------------------------------------------------------- #
def init_params(key, input_dims, h1, h2):
    k1, k2, k3, k4 = jax.random.split(key, 4)
    lim1 = 1.0 / (input_dims ** 0.5)
    lim2 = 1.0 / (h1 ** 0.5)
    w1 = jax.random.uniform(k1, (input_dims, h1), jnp.float32, -lim1, lim1)
    b1 = jax.random.uniform(k2, (h1,), jnp.float32, -lim1, lim1)
    w2 = jax.random.uniform(k3, (h1, h2), jnp.float32, -lim2, lim2)
    b2 = jax.random.uniform(k4, (h2,), jnp.float32, -lim2, lim2)
    return w1, b1, w2, b2


if __name__ == "__main__":
    # Small shapes consistent with the module: x of shape (B, T, input_dims).
    B, T, input_dims, h1, h2 = 2, 8, 32, 64, 16

    key = jax.random.PRNGKey(0)
    kx, kp = jax.random.split(key)
    x = jax.random.normal(kx, (B, T, input_dims), jnp.float32)
    w1, b1, w2, b2 = init_params(kp, input_dims, h1, h2)

    out = projector_forward(x, w1, b1, w2, b2)
    out = jax.block_until_ready(out)

    # Sanity check against a plain-JAX reference of the same math.
    ref = jnp.maximum(x.astype(jnp.float32) @ w1 + b1[None, None, :], 0.0) @ w2
    ref = ref + b2[None, None, :]
    ref = jnp.transpose(ref, (0, 2, 1))                       # (B, H2, T)

    assert out.shape == (B, h2, T), out.shape
    assert jnp.allclose(out, ref, atol=1e-5, rtol=1e-5), float(
        jnp.max(jnp.abs(out - ref)))

    print("KERNEL_OK")
</pallas_src>

<mosaic_0001>
module attributes {stable_mosaic.version = 11 : i64} {
  func.func @_projector_kernel(%arg0: i32, %arg1: i32, %arg2: memref<1x8x32xf32, #tpu.memory_space<vmem>>, %arg3: memref<32x64xf32, #tpu.memory_space<vmem>>, %arg4: memref<1x64xf32, #tpu.memory_space<vmem>>, %arg5: memref<16x64xf32, #tpu.memory_space<vmem>>, %arg6: memref<16x1xf32, #tpu.memory_space<vmem>>, %arg7: memref<1x16x8xf32, #tpu.memory_space<vmem>>) attributes {dimension_semantics = [#tpu.dimension_semantics<parallel>, #tpu.dimension_semantics<parallel>], iteration_bounds = array<i64: 2, 1>, scalar_prefetch = 0 : i64, scratch_operands = 0 : i64, tpu.core_type = #tpu.core_type<tc>, window_params = [{transform_indices = @transform_0, window_bounds = array<i64: 1, 8, 32>}, {pipeline_mode = #tpu.pipeline_mode<synchronous>, transform_indices = @transform_1, window_bounds = array<i64: 32, 64>}, {pipeline_mode = #tpu.pipeline_mode<synchronous>, transform_indices = @transform_2, window_bounds = array<i64: 1, 64>}, {pipeline_mode = #tpu.pipeline_mode<synchronous>, transform_indices = @transform_3, window_bounds = array<i64: 16, 64>}, {pipeline_mode = #tpu.pipeline_mode<synchronous>, transform_indices = @transform_4, window_bounds = array<i64: 16, 1>}, {transform_indices = @transform_5, window_bounds = array<i64: 1, 16, 8>}]} {
    %c0 = arith.constant 0 : index
    %c0_0 = arith.constant 0 : index
    %c0_1 = arith.constant 0 : index
    %0 = vector.load %arg2[%c0, %c0_0, %c0_1] : memref<1x8x32xf32, #tpu.memory_space<vmem>>, vector<1x8x32xf32>
    %1 = vector.shape_cast %0 : vector<1x8x32xf32> to vector<8x32xf32>
    %c0_2 = arith.constant 0 : index
    %c0_3 = arith.constant 0 : index
    %2 = vector.load %arg3[%c0_2, %c0_3] : memref<32x64xf32, #tpu.memory_space<vmem>>, vector<32x64xf32>
    %cst = arith.constant dense<0.000000e+00> : vector<8x64xf32>
    %3 = tpu.matmul %1, %2, %cst {dimension_numbers = #tpu.dot_dimension_numbers<[1], [0], [0], [1], [0, 0, 1, 1], [], []>} : vector<8x32xf32>, vector<32x64xf32>, vector<8x64xf32> -> vector<8x64xf32>
    %c0_4 = arith.constant 0 : index
    %c0_5 = arith.constant 0 : index
    %4 = vector.load %arg4[%c0_4, %c0_5] : memref<1x64xf32, #tpu.memory_space<vmem>>, vector<1x64xf32>
    %5 = vector.broadcast %4 : vector<1x64xf32> to vector<8x64xf32>
    %6 = arith.addf %3, %5 : vector<8x64xf32>
    %cst_6 = arith.constant 0.000000e+00 : f32
    %7 = vector.broadcast %cst_6 : f32 to vector<8x64xf32>
    %8 = arith.maximumf %6, %7 : vector<8x64xf32>
    %c0_7 = arith.constant 0 : index
    %c0_8 = arith.constant 0 : index
    %9 = vector.load %arg5[%c0_7, %c0_8] : memref<16x64xf32, #tpu.memory_space<vmem>>, vector<16x64xf32>
    %cst_9 = arith.constant dense<0.000000e+00> : vector<16x8xf32>
    %10 = tpu.matmul %9, %8, %cst_9 {dimension_numbers = #tpu.dot_dimension_numbers<[1], [1], [0], [0], [0, 0, 1, 0], [], []>} : vector<16x64xf32>, vector<8x64xf32>, vector<16x8xf32> -> vector<16x8xf32>
    %c0_10 = arith.constant 0 : index
    %c0_11 = arith.constant 0 : index
    %11 = vector.load %arg6[%c0_10, %c0_11] : memref<16x1xf32, #tpu.memory_space<vmem>>, vector<16x1xf32>
    %12 = vector.broadcast %11 : vector<16x1xf32> to vector<16x8xf32>
    %13 = arith.addf %10, %12 : vector<16x8xf32>
    %c0_12 = arith.constant 0 : index
    %c0_13 = arith.constant 0 : index
    %c0_14 = arith.constant 0 : index
    %14 = vector.load %arg7[%c0_12, %c0_13, %c0_14] : memref<1x16x8xf32, #tpu.memory_space<vmem>>, vector<1x16x8xf32>
    %15 = vector.shape_cast %14 : vector<1x16x8xf32> to vector<16x8xf32>
    %16 = vector.shape_cast %13 : vector<16x8xf32> to vector<1x16x8xf32>
    tpu.vector_store %arg7[%c0_12, %c0_13, %c0_14], %16 {strides = array<i32>} : memref<1x16x8xf32, #tpu.memory_space<vmem>>, vector<1x16x8xf32>,
    return
  }
  func.func @transform_0(%arg0: i32, %arg1: i32) -> (i32, i32, i32) {
    %c0_i32 = arith.constant 0 : i32
    %c0_i32_0 = arith.constant 0 : i32
    return %arg0, %arg1, %c0_i32 : i32, i32, i32
  }
  func.func @transform_1(%arg0: i32, %arg1: i32) -> (i32, i32) {
    %c0_i32 = arith.constant 0 : i32
    %c0_i32_0 = arith.constant 0 : i32
    %c0_i32_1 = arith.constant 0 : i32
    return %c0_i32, %c0_i32_0 : i32, i32
  }
  func.func @transform_2(%arg0: i32, %arg1: i32) -> (i32, i32) {
    %c0_i32 = arith.constant 0 : i32
    %c0_i32_0 = arith.constant 0 : i32
    %c0_i32_1 = arith.constant 0 : i32
    return %c0_i32, %c0_i32_0 : i32, i32
  }
  func.func @transform_3(%arg0: i32, %arg1: i32) -> (i32, i32) {
    %c0_i32 = arith.constant 0 : i32
    %c0_i32_0 = arith.constant 0 : i32
    %c0_i32_1 = arith.constant 0 : i32
    return %c0_i32, %c0_i32_0 : i32, i32
  }
  func.func @transform_4(%arg0: i32, %arg1: i32) -> (i32, i32) {
    %c0_i32 = arith.constant 0 : i32
    %c0_i32_0 = arith.constant 0 : i32
    %c0_i32_1 = arith.constant 0 : i32
    return %c0_i32, %c0_i32_0 : i32, i32
  }
  func.func @transform_5(%arg0: i32, %arg1: i32) -> (i32, i32, i32) {
    %c0_i32 = arith.constant 0 : i32
    %c0_i32_0 = arith.constant 0 : i32
    return %arg0, %c0_i32, %arg1 : i32, i32, i32
  }
}

</mosaic_0001>

<llo_original>
// kernel: tpu_custom_call.1
$region0: #{tpu_custom_call.1}
  #allocation0 [shape = 'u32[]', space=smem, size = 0x4, offset = 0x4, fixed_abs, tag = 'smem constant byte address 0x4 - core index']
  #allocation1 [shape = 'u32[144,128]{1,0:T(1,128)}', space=vmem, size = 0x12000, scoped, tag = 'internal scratch']
  %s0 = inlined_call_operand.vmem [shape: f32[2,8,32], index: 0, kind: input, shape index: {}]
  %s1 = inlined_call_operand.hbm [shape: f32[32,64], index: 1, kind: input, shape index: {}]
  %s2 = inlined_call_operand.vmem [shape: f32[1,64], index: 2, kind: input, shape index: {}]
  %s3 = inlined_call_operand.hbm [shape: f32[16,64], index: 3, kind: input, shape index: {}]
  %s4 = inlined_call_operand.vmem [shape: f32[16,1], index: 4, kind: input, shape index: {}]
  %s5 = inlined_call_operand.vmem [shape: f32[2,16,8], index: 5, kind: output, shape index: {}]
  %s6 = sld [smem:[#allocation0]]
  $region61: #{tpu_custom_call.1} parent=0
    _
  %s8 = ssub.s32 1, %s6
  %s9 = scalar_select 0, %s8, %s6
  $region1: #{tpu_custom_call.1} parent=0
    #allocation2 [shape = 'u8[16384]{0}', space=vmem, size = 0x4000, scoped, tag = 'input window, operand 1, single buffered']
    #allocation3 [shape = 's32[2]{0}', space=sflag, size = 0x8, scoped, tag = 'scoped memory for tpu_custom_call.1']
    #allocation4 [shape = 'u8[8192]{0}', space=vmem, size = 0x2000, scoped, tag = 'input window, operand 3, single buffered']
    #allocation5 [shape = 's32[1]{0}', space=sflag, size = 0x4, scoped, tag = 'scoped memory for tpu_custom_call.1']
    %10 = vsyncpa [#allocation3], 0
    %11 = vsyncpa [#allocation5], 0
    loop: start=0, step=1, limit=4
    $region2: #{tpu_custom_call.1} parent=1 // loop_pre_header
      _
    $region3: #{tpu_custom_call.1} parent=1 // loop_header
      %s13 = sphi 0, %s17
      %p14 = scmp.ge.s32.totalorder %s13, 4
      %s20 = sphi 0, %s32
      %s21 = sphi 0, %s28
      %s22 = sphi 0, %s20
      %s23 = sphi 0, %s21
      %s24 = sphi 0, %s22
      %s25 = sphi 0, %s23
      %s37 = sphi 0, %s39
      %s40 = sphi 0, %s37
      %s41 = sphi 0, %s40
      %s57 = sphi 0, %s41
      %s61 = sphi 0, %s61
      %s63 = sphi 0, %s61
      %s64 = sphi 0, %s63
      %s78 = sphi 0, %s64
      %s82 = sphi 0, %s82
      %s84 = sphi 0, %s82
      %s85 = sphi 0, %s84
      %s99 = sphi 0, %s85
      %s103 = sphi 0, %s103
      %s105 = sphi 0, %s103
      %s106 = sphi 0, %s105
      %s120 = sphi 0, %s106
      %s124 = sphi 0, %s124
      %s126 = sphi 0, %s124
      %s127 = sphi 0, %s126
      %s141 = sphi 0, %s127
      %s149 = sphi 0, %s151
      %s152 = sphi 0, %s149
      %s153 = sphi 0, %s152
      %s169 = sphi 0, %s153
    $region4: #{tpu_custom_call.1} parent=1 // loop_header_branch
      %16 = sbr.rel (%p14) target = $region8
    $region5: #{tpu_custom_call.1} parent=1 // loop_body
      %s18 = ssub.s32 %s13, 1
      %s19 = ssub.s32 %s13, 2
      %s26 = sadd.s32 1, %s21
      %p27 = scmp.ge.s32.totalorder %s26, 1
      %s28 = scalar_select %p27, 0, %s26
      %s29 = sadd.s32 1, %s20
      %s30 = scalar_select %p27, %s29, %s20
      %p31 = scmp.ge.s32.totalorder %s30, 2
      %s32 = scalar_select %p31, 0, %s30
      %s33 = ssub.s32 %s20, %s32
      %s34 = ssub.s32 %s21, %s28
      %s35 = sor.u32 %s33, %s34
      %p36 = scmp.eq.s32.totalorder %s35, 0
      %s38 = sadd.s32 %s37, 1
      %s39 = scalar_select %p36, %s37, %s38
      %p42 = pneg %p36
      %p43 = scmp.eq.s32.totalorder %s13, 1
      %p44 = por %p42, %p43
      %p45 = scmp.ne.s32.totalorder %s37, %s40
      %p46 = scmp.eq.s32.totalorder %s13, 0
      %p47 = por %p45, %p46
      %p48 = scmp.ne.s32.totalorder %s37, %s40
      %p49 = scmp.eq.s32.totalorder %s18, 1
      %p50 = por %p48, %p49
      %p51 = scmp.ne.s32.totalorder %s40, %s41
      %p52 = scmp.eq.s32.totalorder %s18, 0
      %p53 = por %p51, %p52
      %p54 = scmp.ne.s32.totalorder %s40, %s41
      %p55 = scmp.eq.s32.totalorder %s19, 1
      %p56 = por %p54, %p55
      %p58 = scmp.ne.s32.totalorder %s41, %s57
      %p59 = scmp.eq.s32.totalorder %s19, 0
      %p60 = por %p58, %p59
      %s62 = sadd.s32 %s61, 1
      %p65 = scmp.eq.s32.totalorder %s13, 1
      %p66 = scmp.ne.s32.totalorder %s61, %s63
      %p67 = scmp.eq.s32.totalorder %s13, 0
      %p68 = por %p66, %p67
      %p69 = scmp.ne.s32.totalorder %s61, %s63
      %p70 = scmp.eq.s32.totalorder %s18, 1
      %p71 = por %p69, %p70
      %p72 = scmp.ne.s32.totalorder %s63, %s64
      %p73 = scmp.eq.s32.totalorder %s18, 0
      %p74 = por %p72, %p73
      %p75 = scmp.ne.s32.totalorder %s63, %s64
      %p76 = scmp.eq.s32.totalorder %s19, 1
      %p77 = por %p75, %p76
      %p79 = scmp.ne.s32.totalorder %s64, %s78
      %p80 = scmp.eq.s32.totalorder %s19, 0
      %p81 = por %p79, %p80
      %s83 = sadd.s32 %s82, 1
      %p86 = scmp.eq.s32.totalorder %s13, 1
      %p87 = scmp.ne.s32.totalorder %s82, %s84
      %p88 = scmp.eq.s32.totalorder %s13, 0
      %p89 = por %p87, %p88
      %p90 = scmp.ne.s32.totalorder %s82, %s84
      %p91 = scmp.eq.s32.totalorder %s18, 1
      %p92 = por %p90, %p91
      %p93 = scmp.ne.s32.totalorder %s84, %s85
      %p94 = scmp.eq.s32.totalorder %s18, 0
      %p95 = por %p93, %p94
      %p96 = scmp.ne.s32.totalorder %s84, %s85
      %p97 = scmp.eq.s32.totalorder %s19, 1
      %p98 = por %p96, %p97
      %p100 = scmp.ne.s32.totalorder %s85, %s99
      %p101 = scmp.eq.s32.totalorder %s19, 0
      %p102 = por %p100, %p101
      %s104 = sadd.s32 %s103, 1
      %p107 = scmp.eq.s32.totalorder %s13, 1
      %p108 = scmp.ne.s32.totalorder %s103, %s105
      %p109 = scmp.eq.s32.totalorder %s13, 0
      %p110 = por %p108, %p109
      %p111 = scmp.ne.s32.totalorder %s103, %s105
      %p112 = scmp.eq.s32.totalorder %s18, 1
      %p113 = por %p111, %p112
      %p114 = scmp.ne.s32.totalorder %s105, %s106
      %p115 = scmp.eq.s32.totalorder %s18, 0
      %p116 = por %p114, %p115
      %p117 = scmp.ne.s32.totalorder %s105, %s106
      %p118 = scmp.eq.s32.totalorder %s19, 1
      %p119 = por %p117, %p118
      %p121 = scmp.ne.s32.totalorder %s106, %s120
      %p122 = scmp.eq.s32.totalorder %s19, 0
      %p123 = por %p121, %p122
      %s125 = sadd.s32 %s124, 1
      %p128 = scmp.eq.s32.totalorder %s13, 1
      %p129 = scmp.ne.s32.totalorder %s124, %s126
      %p130 = scmp.eq.s32.totalorder %s13, 0
      %p131 = por %p129, %p130
      %p132 = scmp.ne.s32.totalorder %s124, %s126
      %p133 = scmp.eq.s32.totalorder %s18, 1
      %p134 = por %p132, %p133
      %p135 = scmp.ne.s32.totalorder %s126, %s127
      %p136 = scmp.eq.s32.totalorder %s18, 0
      %p137 = por %p135, %p136
      %p138 = scmp.ne.s32.totalorder %s126, %s127
      %p139 = scmp.eq.s32.totalorder %s19, 1
      %p140 = por %p138, %p139
      %p142 = scmp.ne.s32.totalorder %s127, %s141
      %p143 = scmp.eq.s32.totalorder %s19, 0
      %p144 = por %p142, %p143
      %s145 = ssub.s32 %s20, %s32
      %s146 = ssub.s32 %s21, %s28
      %s147 = sor.u32 %s145, %s146
      %p148 = scmp.eq.s32.totalorder %s147, 0
      %s150 = sadd.s32 %s149, 1
      %s151 = scalar_select %p148, %s149, %s150
      %p154 = pneg %p148
      %p155 = scmp.eq.s32.totalorder %s13, 1
      %p156 = por %p154, %p155
      %p157 = scmp.ne.s32.totalorder %s149, %s152
      %p158 = scmp.eq.s32.totalorder %s13, 0
      %p159 = por %p157, %p158
      %p160 = scmp.ne.s32.totalorder %s149, %s152
      %p161 = scmp.eq.s32.totalorder %s18, 1
      %p162 = por %p160, %p161
      %p163 = scmp.ne.s32.totalorder %s152, %s153
      %p164 = scmp.eq.s32.totalorder %s18, 0
      %p165 = por %p163, %p164
      %p166 = scmp.ne.s32.totalorder %s152, %s153
      %p167 = scmp.eq.s32.totalorder %s19, 1
      %p168 = por %p166, %p167
      %p170 = scmp.ne.s32.totalorder %s153, %s169
      %p171 = scmp.eq.s32.totalorder %s19, 0
      %p172 = por %p170, %p171
      %p173 = scmp.le.s32.totalorder 1, %s13
      %p174 = scmp.lt.s32.totalorder %s13, 3
      %p175 = pnand %p173, %p174
      %p176 = pneg %p175
      // Predicated region
      $region9: #{tpu_custom_call.1} parent=5 // pred_check
        _
      $region10: #{tpu_custom_call.1} parent=5 // pred_check_branch
        %178 = sbr.rel (%p175) target = $region12
      $region11: #{tpu_custom_call.1} parent=5 // pred_region
        %s179 = ssub.s32 %s13, 1
        // Predicated region
        $region13: #{tpu_custom_call.1} parent=11 // pred_check
          %p180 = pneg %p74
        $region14: #{tpu_custom_call.1} parent=11 // pred_check_branch
          %182 = sbr.rel (%p180) target = $region16
        $region15: #{tpu_custom_call.1} parent=11 // pred_region
          %s184 = ssub.s32 512, 512
          %185 = vsyncadd [#allocation3], %s184
          %s186 = sshll.u32 [#allocation2], 4
          %s187 = int_to_ptr.vmem [resolvable:$true] %s186
          %192 = dma.hbm_to_vmem [thread:$0]  %s1, 512, %s187, [#allocation3], 128, 128, 8
        $region16: #{tpu_custom_call.1} parent=11 // pred_fallthru
          _
        // Predicated region
        $region17: #{tpu_custom_call.1} parent=11 // pred_check
          %p193 = pneg %p95
        $region18: #{tpu_custom_call.1} parent=11 // pred_check_branch
          %195 = sbr.rel (%p193) target = $region20
        $region19: #{tpu_custom_call.1} parent=11 // pred_region
          _
        $region20: #{tpu_custom_call.1} parent=11 // pred_fallthru
          _
        // Predicated region
        $region21: #{tpu_custom_call.1} parent=11 // pred_check
          %p196 = pneg %p116
        $region22: #{tpu_custom_call.1} parent=11 // pred_check_branch
          %198 = sbr.rel (%p196) target = $region24
        $region23: #{tpu_custom_call.1} parent=11 // pred_region
          %s200 = ssub.s32 256, 256
          %201 = vsyncadd [#allocation5], %s200
          %s202 = sshll.u32 [#allocation4], 4
          %s203 = int_to_ptr.vmem [resolvable:$true] %s202
          %208 = dma.hbm_to_vmem [thread:$0]  %s3, 256, %s203, [#allocation5], 128, 128, 8
        $region24: #{tpu_custom_call.1} parent=11 // pred_fallthru
          _
        // Predicated region
        $region25: #{tpu_custom_call.1} parent=11 // pred_check
          %p209 = pneg %p137
        $region26: #{tpu_custom_call.1} parent=11 // pred_check_branch
          %211 = sbr.rel (%p209) target = $region28
        $region27: #{tpu_custom_call.1} parent=11 // pred_region
          _
        $region28: #{tpu_custom_call.1} parent=11 // pred_fallthru
          _
      $region12: #{tpu_custom_call.1} parent=5 // pred_fallthru
        _
      %p212 = scmp.lt.s32.totalorder %s13, 2
      // Predicated region
      $region29: #{tpu_custom_call.1} parent=5 // pred_check
        %p213 = pneg %p212
      $region30: #{tpu_custom_call.1} parent=5 // pred_check_branch
        %215 = sbr.rel (%p213) target = $region32
      $region31: #{tpu_custom_call.1} parent=5 // pred_region
        // Predicated region
        $region33: #{tpu_custom_call.1} parent=31 // pred_check
          %p216 = pneg %p47
        $region34: #{tpu_custom_call.1} parent=31 // pred_check_branch
          %218 = sbr.rel (%p216) target = $region36
        $region35: #{tpu_custom_call.1} parent=31 // pred_region
          %p219 = scmp.lt.s32.totalorder %s20, 1
          %s220 = scalar_select %p219, %s20, 1
          %p221 = scmp.lt.s32.totalorder %s21, 0
          %s222 = scalar_select %p221, %s21, 0
          %s223 = sadd.s32 %s222, %s220
          %s224 = smul.addr %s223, 8
          %s225 = scalar_lea.vmem %s0, %s224
        $region36: #{tpu_custom_call.1} parent=31 // pred_fallthru
          _
      $region32: #{tpu_custom_call.1} parent=5 // pred_fallthru
        _
      %p226 = scmp.le.s32.totalorder 1, %s13
      %p227 = scmp.lt.s32.totalorder %s13, 3
      %p228 = pnand %p226, %p227
      %p229 = pneg %p228
      // Predicated region
      $region37: #{tpu_custom_call.1} parent=5 // pred_check
        _
      $region38: #{tpu_custom_call.1} parent=5 // pred_check_branch
        %231 = sbr.rel (%p228) target = $region40
      $region39: #{tpu_custom_call.1} parent=5 // pred_region
        %s232 = ssub.s32 %s13, 1
        // Predicated region
        $region41: #{tpu_custom_call.1} parent=39 // pred_check
          %p233 = pneg %p74
        $region42: #{tpu_custom_call.1} parent=39 // pred_check_branch
          %235 = sbr.rel (%p233) target = $region44
        $region43: #{tpu_custom_call.1} parent=39 // pred_region
          %236 = dma.done [#allocation3], 512
        $region44: #{tpu_custom_call.1} parent=39 // pred_fallthru
          _
        // Predicated region
        $region45: #{tpu_custom_call.1} parent=39 // pred_check
          %p237 = pneg %p116
        $region46: #{tpu_custom_call.1} parent=39 // pred_check_branch
          %239 = sbr.rel (%p237) target = $region48
        $region47: #{tpu_custom_call.1} parent=39 // pred_region
          %240 = dma.done [#allocation5], 256
        $region48: #{tpu_custom_call.1} parent=39 // pred_fallthru
          _
        %p241 = scmp.lt.s32.totalorder %s22, 1
        %s242 = scalar_select %p241, %s22, 1
        %p243 = scmp.lt.s32.totalorder %s23, 0
        %s244 = scalar_select %p243, %s23, 0
        %s245 = sadd.s32 %s244, %s242
        %s246 = smul.addr %s245, 8
        %s247 = scalar_lea.vmem %s0, %s246
        %p248 = pneg %p53
        %p249 = pneg %p50
        %p250 = pneg %p74
        %p251 = pneg %p71
        %p252 = pneg %p95
        %p253 = pneg %p92
        %p254 = pneg %p116
        %p255 = pneg %p113
        %p256 = pneg %p137
        %p257 = pneg %p134
        %p258 = pneg %p165
        %p259 = pneg %p162
        %p260 = scmp.lt.s32.totalorder %s22, 1
        %s261 = scalar_select %p260, %s22, 1
        %p262 = scmp.lt.s32.totalorder %s23, 0
        %s263 = scalar_select %p262, %s23, 0
        %s264 = smul.addr %s261, 2
        %s265 = sadd.s32 %s263, %s264
        %s266 = smul.addr %s265, 8
        %s267 = scalar_lea.vmem %s5, %s266
        %p268 = scmp.lt.s32.totalorder %s22, 1
        %s269 = scalar_select %p268, %s22, 1
        %p270 = scmp.lt.s32.totalorder %s23, 0
        %s271 = scalar_select %p270, %s23, 0
        %s272 = sadd.s32 %s271, %s269
        %s273 = smul.addr %s272, 8
        %s274 = scalar_lea.vmem %s0, %s273
        %p275 = scmp.lt.s32.totalorder %s22, 1
        %s276 = scalar_select %p275, %s22, 1
        %p277 = scmp.lt.s32.totalorder %s23, 0
        %s278 = scalar_select %p277, %s23, 0
        %s279 = smul.addr %s276, 2
        %s280 = sadd.s32 %s278, %s279
        %s281 = smul.addr %s280, 8
        %s282 = scalar_lea.vmem %s5, %s281
        %v283 = vld [vmem:[%s274] sm:$0xff]
        %v284 = vld [vmem:[#allocation2] sm:$0xff]
        %v285 = vld [vmem:[#allocation2 + $0x8] sm:$0xff]
        %v286 = vld [vmem:[#allocation2 + $0x10] sm:$0xff]
        %v287 = vld [vmem:[#allocation2 + $0x18] sm:$0xff]
        %v288 = vld [vmem:[%s2] sm:$0x1]
        %v290 = vlaneseq
        %v291 = vshrl.u32 %v290, 7
        %v292 = vsub.s32 0, %v291
        %v293 = vrot.slane %v288, %v292
        %vm295 = vcmask 261120
        %v297 = vsel %vm295, %v283, 0
        %299 = vmatprep.subr.mxu0 0.0
        %300 = vmatpush1.msra.mxu0 0.0
        %301 = vmatprep.subr.mxu0 0.0
        %302 = vmatpush1.msra.mxu0 0.0
        %303 = vmatprep.subr.mxu0 0.0
        %304 = vmatpush1.msra.mxu0 0.0
        %305 = vmatprep.subr.mxu0 0.0
        %306 = vmatpush1.msra.mxu0 0.0
        %307 = vmatprep.subr.mxu0 0.0
        %308 = vmatpush1.msra.mxu0 0.0
        %309 = vmatprep.subr.mxu0 0.0
        %310 = vmatpush1.msra.mxu0 0.0
        %311 = vmatprep.subr.mxu0 0.0
        %312 = vmatpush1.msra.mxu0 0.0
        %313 = vmatprep.subr.mxu0 0.0
        %314 = vmatpush1.msra.mxu0 0.0
        %315 = vmatprep.subr.mxu0 0.0
        %316 = vmatpush1.msra.mxu0 0.0
        %317 = vmatprep.subr.mxu0 0.0
        %318 = vmatpush1.msra.mxu0 0.0
        %319 = vmatprep.subr.mxu0 0.0
        %320 = vmatpush1.msra.mxu0 0.0
        %321 = vmatprep.subr.mxu0 0.0
        %322 = vmatpush1.msra.mxu0 0.0
        %323 = vmatprep.subr.mxu0 0.0
        %324 = vmatpush1.msra.mxu0 %v287
        %325 = vmatprep.subr.mxu0 0.0
        %326 = vmatpush1.msra.mxu0 %v286
        %327 = vmatprep.subr.mxu0 0.0
        %328 = vmatpush1.msra.mxu0 %v285
        %329 = vmatprep.subr.mxu0 0.0
        %330 = vmatpush1.msra.mxu0 %v284
        %331 = vmatprep.subr.mxu0 0.0
        %332 = vmatpush2.msra.mxu0 0.0
        %333 = vmatprep.subr.mxu0 0.0
        %334 = vmatpush2.msra.mxu0 0.0
        %335 = vmatprep.subr.mxu0 0.0
        %336 = vmatpush2.msra.mxu0 0.0
        %337 = vmatprep.subr.mxu0 0.0
        %338 = vmatpush2.msra.mxu0 0.0
        %339 = vmatprep.subr.mxu0 0.0
        %340 = vmatpush2.msra.mxu0 0.0
        %341 = vmatprep.subr.mxu0 0.0
        %342 = vmatpush2.msra.mxu0 0.0
        %343 = vmatprep.subr.mxu0 0.0
        %344 = vmatpush2.msra.mxu0 0.0
        %345 = vmatprep.subr.mxu0 0.0
        %346 = vmatpush2.msra.mxu0 0.0
        %347 = vmatprep.subr.mxu0 0.0
        %348 = vmatpush2.msra.mxu0 0.0
        %349 = vmatprep.subr.mxu0 0.0
        %350 = vmatpush2.msra.mxu0 0.0
        %351 = vmatprep.subr.mxu0 0.0
        %352 = vmatpush2.msra.mxu0 0.0
        %353 = vmatprep.subr.mxu0 0.0
        %354 = vmatpush2.msra.mxu0 0.0
        %355 = vmatprep.subr.mxu0 0.0
        %356 = vmatpush2.msra.mxu0 0.0
        %357 = vmatprep.subr.mxu0 0.0
        %358 = vmatpush2.msra.mxu0 0.0
        %359 = vmatprep.subr.mxu0 0.0
        %360 = vmatpush2.msra.mxu0 0.0
        %361 = vmatprep.subr.mxu0 0.0
        %362 = vmatpush2.msra.mxu0 0.0
        %363 = vmatprep.mubr.f32.mxu0 0.0
        %364 = vmatmul.mubr.f32.gmra.mxu0 %v297
        %v365 = vpop.f32.mrf.mxu0
        %v366 = vadd.f32 %v293, %v365
        %v367 = vpop.f32.mrf.mxu0
        %368 = vdwg.mxu0
        %v369 = vmax.f32 %v366, 0.0
        %v370 = vld [vmem:[#allocation4] sm:$0xff]
        %v371 = vld [vmem:[#allocation4 + $0x8] sm:$0xff]
        %v372 = vld [vmem:[%s4] sm:$0xff]
        %v373 = vld [vmem:[%s4 + $0x8] sm:$0xff]
        %375 = vset.pattern.permute.xlu0 0
        %376 = vperm.xlu0 %375, %v372
        %v377 = vpop.permute.xlu0 %376
        %380 = vset.pattern.permute.xlu0 0
        %381 = vperm.xlu0 %380, %v373
        %v382 = vpop.permute.xlu0 %381
        %vm384 = vcmask 523264
        %v386 = vsel %vm384, %v370, 0
        %v389 = vsel %vm384, %v371, 0
        %v392 = vsel %vm384, %v369, 0
        %394 = vmatprep.subr.mxu0 0.0
        %395 = vmatpush1.xpose.msra.mxu0 0.0
        %396 = vmatprep.subr.mxu0 0.0
        %397 = vmatpush1.xpose.msra.mxu0 0.0
        %398 = vmatprep.subr.mxu0 0.0
        %399 = vmatpush1.xpose.msra.mxu0 0.0
        %400 = vmatprep.subr.mxu0 0.0
        %401 = vmatpush1.xpose.msra.mxu0 0.0
        %402 = vmatprep.subr.mxu0 0.0
        %403 = vmatpush1.xpose.msra.mxu0 0.0
        %404 = vmatprep.subr.mxu0 0.0
        %405 = vmatpush1.xpose.msra.mxu0 0.0
        %406 = vmatprep.subr.mxu0 0.0
        %407 = vmatpush1.xpose.msra.mxu0 0.0
        %408 = vmatprep.subr.mxu0 0.0
        %409 = vmatpush1.xpose.msra.mxu0 0.0
        %410 = vmatprep.subr.mxu0 0.0
        %411 = vmatpush1.xpose.msra.mxu0 0.0
        %412 = vmatprep.subr.mxu0 0.0
        %413 = vmatpush1.xpose.msra.mxu0 0.0
        %414 = vmatprep.subr.mxu0 0.0
        %415 = vmatpush1.xpose.msra.mxu0 0.0
        %416 = vmatprep.subr.mxu0 0.0
        %417 = vmatpush1.xpose.msra.mxu0 0.0
        %418 = vmatprep.subr.mxu0 0.0
        %419 = vmatpush1.xpose.msra.mxu0 0.0
        %420 = vmatprep.subr.mxu0 0.0
        %421 = vmatpush1.xpose.msra.mxu0 0.0
        %422 = vmatprep.subr.mxu0 0.0
        %423 = vmatpush1.xpose.msra.mxu0 0.0
        %424 = vmatprep.subr.mxu0 0.0
        %425 = vmatpush1.xpose.msra.mxu0 %v392
        %426 = vmatprep.subr.mxu0 0.0
        %427 = vmatpush2.xpose.msra.mxu0 0.0
        %428 = vmatprep.subr.mxu0 0.0
        %429 = vmatpush2.xpose.msra.mxu0 0.0
        %430 = vmatprep.subr.mxu0 0.0
        %431 = vmatpush2.xpose.msra.mxu0 0.0
        %432 = vmatprep.subr.mxu0 0.0
        %433 = vmatpush2.xpose.msra.mxu0 0.0
        %434 = vmatprep.subr.mxu0 0.0
        %435 = vmatpush2.xpose.msra.mxu0 0.0
        %436 = vmatprep.subr.mxu0 0.0
        %437 = vmatpush2.xpose.msra.mxu0 0.0
        %438 = vmatprep.subr.mxu0 0.0
        %439 = vmatpush2.xpose.msra.mxu0 0.0
        %440 = vmatprep.subr.mxu0 0.0
        %441 = vmatpush2.xpose.msra.mxu0 0.0
        %442 = vmatprep.subr.mxu0 0.0
        %443 = vmatpush2.xpose.msra.mxu0 0.0
        %444 = vmatprep.subr.mxu0 0.0
        %445 = vmatpush2.xpose.msra.mxu0 0.0
        %446 = vmatprep.subr.mxu0 0.0
        %447 = vmatpush2.xpose.msra.mxu0 0.0
        %448 = vmatprep.subr.mxu0 0.0
        %449 = vmatpush2.xpose.msra.mxu0 0.0
        %450 = vmatprep.subr.mxu0 0.0
        %451 = vmatpush2.xpose.msra.mxu0 0.0
        %452 = vmatprep.subr.mxu0 0.0
        %453 = vmatpush2.xpose.msra.mxu0 0.0
        %454 = vmatprep.subr.mxu0 0.0
        %455 = vmatpush2.xpose.msra.mxu0 0.0
        %456 = vmatprep.subr.mxu0 0.0
        %457 = vmatpush2.xpose.msra.mxu0 0.0
        %458 = vmatprep.mubr.f32.mxu0 0.0
        %459 = vmatmul.mubr.f32.gmra.mxu0 %v386
        %v460 = vpop.f32.mrf.mxu0
        %v461 = vadd.f32 %v377, %v460
        %v462 = vpop.f32.mrf.mxu0
        %463 = vmatprep.mubr.f32.mxu0 0.0
        %464 = vmatmul.mubr.f32.gmra.mxu0 %v389
        %v465 = vpop.f32.mrf.mxu0
        %v466 = vadd.f32 %v382, %v465
        %v467 = vpop.f32.mrf.mxu0
        %468 = vdwg.mxu0
        %vm469 = vcmask 64512
        %470 = vst.msk [vmem:[%s282] sm:$0xff] %vm469, %v461
        %471 = vst.msk [vmem:[%s282 + $0x8] sm:$0xff] %vm469, %v466
        %p472 = scmp.lt.s32.totalorder %s22, 1
        %s473 = scalar_select %p472, %s22, 1
        %p474 = scmp.lt.s32.totalorder %s23, 0
        %s475 = scalar_select %p474, %s23, 0
        %s476 = smul.addr %s473, 2
        %s477 = sadd.s32 %s475, %s476
        %s478 = smul.addr %s477, 8
        %s479 = scalar_lea.vmem %s5, %s478
        // Predicated region
        $region49: #{tpu_custom_call.1} parent=39 // pred_check
          %p480 = pneg %p162
        $region50: #{tpu_custom_call.1} parent=39 // pred_check_branch
          %482 = sbr.rel (%p480) target = $region52
        $region51: #{tpu_custom_call.1} parent=39 // pred_region
          _
        $region52: #{tpu_custom_call.1} parent=39 // pred_fallthru
          _
      $region40: #{tpu_custom_call.1} parent=5 // pred_fallthru
        _
      %p483 = scmp.le.s32.totalorder 2, %s13
      // Predicated region
      $region53: #{tpu_custom_call.1} parent=5 // pred_check
        %p484 = pneg %p483
      $region54: #{tpu_custom_call.1} parent=5 // pred_check_branch
        %486 = sbr.rel (%p484) target = $region56
      $region55: #{tpu_custom_call.1} parent=5 // pred_region
        %s487 = ssub.s32 %s13, 2
        // Predicated region
        $region57: #{tpu_custom_call.1} parent=55 // pred_check
          %p488 = pneg %p168
        $region58: #{tpu_custom_call.1} parent=55 // pred_check_branch
          %490 = sbr.rel (%p488) target = $region60
        $region59: #{tpu_custom_call.1} parent=55 // pred_region
          %p491 = scmp.lt.s32.totalorder %s24, 1
          %s492 = scalar_select %p491, %s24, 1
          %p493 = scmp.lt.s32.totalorder %s25, 0
          %s494 = scalar_select %p493, %s25, 0
          %s495 = smul.addr %s492, 2
          %s496 = sadd.s32 %s494, %s495
          %s497 = smul.addr %s496, 8
          %s498 = scalar_lea.vmem %s5, %s497
        $region60: #{tpu_custom_call.1} parent=55 // pred_fallthru
          _
      $region56: #{tpu_custom_call.1} parent=5 // pred_fallthru
        _
    $region6: #{tpu_custom_call.1} parent=1 // loop_footer
      %s17 = sadd.s32 1, %s13
    $region7: #{tpu_custom_call.1} parent=1 // loop_footer_branch
      %12 = sbr.rel target = $region3
    $region8: #{tpu_custom_call.1} parent=1 // loop_exit
      _
    %499 = vsyncpa [#allocation3], 1
    %s500 = scalar_lea.sflag [#allocation3], 1
    %501 = vsyncpa %s500, 1
    %502 = vsyncpa [#allocation5], 1

</llo_original>
